<compile_context>
chip_gen: v5e
topology: v5e:2x2
jax: 0.10.0
libtpu: 0.0.40
codegen_flags: <defaults>
</compile_context>

<pallas_src>
import functools

import jax
import jax.numpy as jnp
from jax.experimental import pallas as pl
from jax.experimental.pallas import tpu as pltpu


_C13_12 = 13.0 / 12.0
_SIXTH = 1.0 / 6.0


def _roll(x, shift, n):
    # circular shift along the lane axis; _roll(x, 1)[i] == x[i-1] (jnp.roll semantics)
    return pltpu.roll(x, shift % n, axis=1)


def _wz_pow(r, w_pow):
    # WENO-Z weight exponent. w_pow is a Python value: special-case the default
    # (2) to a single VALU multiply instead of an EUP exp/log float pow.
    if w_pow == 2:
        return r * r
    if float(w_pow).is_integer():
        return jax.lax.integer_pow(r, int(w_pow))
    return r ** w_pow   # general float exponent (EUP transcendental)


def _weno_core(s0, s1, s2, s3, s4, eps, w_pow):
    """WENO-Z reconstruction at the interface, stencil (s0..s4) ordered so the
    reconstruction point sits between s2 and s3.

    Left-biased  (positive flux): (s0..s4) = (f[i-2], f[i-1], f[i], f[i+1], f[i+2])
    Right-biased (negative flux): (s0..s4) = (f[i+3], f[i+2], f[i+1], f[i], f[i-1])

    Built from shared undivided differences d_k = s_{k-1} - s_k (CSE: both the
    smoothness indicators and the candidate polynomials reuse them).
    """
    d1 = s0 - s1
    d2 = s1 - s2
    d3 = s2 - s3
    d4 = s3 - s4

    t0 = d1 - d2            # s0 - 2 s1 + s2
    t1 = d2 - d3            # s1 - 2 s2 + s3
    t2 = d3 - d4            # s2 - 2 s3 + s4
    u0 = d1 - 3.0 * d2      # s0 - 4 s1 + 3 s2
    u1 = d2 + d3            # s1 - s3
    u2 = 3.0 * d3 - d4      # 3 s2 - 4 s3 + s4

    b0 = _C13_12 * t0 * t0 + 0.25 * u0 * u0
    b1 = _C13_12 * t1 * t1 + 0.25 * u1 * u1
    b2 = _C13_12 * t2 * t2 + 0.25 * u2 * u2

    # WENO-Z weights. Exact divisions: the divide/EUP slot has large slack in
    # this VALU-bound kernel, so exactness is free (and keeps the flux within
    # float roundoff of the PyTorch module).
    tau5 = jnp.abs(b0 - b2)
    a0 = 0.1 * (1.0 + _wz_pow(tau5 / (b0 + eps), w_pow))
    a1 = 0.6 * (1.0 + _wz_pow(tau5 / (b1 + eps), w_pow))
    a2 = 0.3 * (1.0 + _wz_pow(tau5 / (b2 + eps), w_pow))

    # Candidate polynomials expressed in the same differences:
    #   q0 = (2 s0 - 7 s1 + 11 s2)/6 = s2 + (2 d1 - 5 d2)/6
    #   q1 = (  -s1 + 5 s2 +  2 s3)/6 = s2 - (d2 + 2 d3)/6
    #   q2 = ( 2 s2 + 5 s3 -    s4)/6 = s2 + (d4 - 4 d3)/6
    q0 = s2 + (2.0 * d1 - 5.0 * d2) * _SIXTH
    q1 = s2 - (d2 + 2.0 * d3) * _SIXTH
    q2 = s2 + (d4 - 4.0 * d3) * _SIXTH

    return (a0 * q0 + a1 * q1 + a2 * q2) / (a0 + a1 + a2)


def _weno_z_p(f, n, eps, w_pow):
    """Left-biased (positive-flux) WENO-Z reconstruction at interface i+1/2."""
    fm2 = _roll(f, 2, n)
    fm1 = _roll(f, 1, n)
    fp1 = _roll(f, -1, n)
    fp2 = _roll(f, -2, n)
    return _weno_core(fm2, fm1, f, fp1, fp2, eps, w_pow)


def _weno_z_n(f, n, eps, w_pow):
    """Right-biased (negative-flux) WENO-Z reconstruction at interface i+1/2."""
    fm1 = _roll(f, 1, n)
    fp1 = _roll(f, -1, n)
    fp2 = _roll(f, -2, n)
    fp3 = _roll(f, -3, n)
    return _weno_core(fp3, fp2, fp1, f, fm1, eps, w_pow)


def kdv_trend_kernel(u_max_ref, u_ref, tau_ref, out_ref, *,
                     n, half_A, c0, neg_inv_dx, nu_over_dx, disp_coef, eps, w_pow):
    u = u_ref[...]              # (tb, n) f32
    tau = tau_ref[...]          # (tb, n) or (1, n) f32 (broadcasts in the sum)
    u_max = u_max_ref[0, 0]     # global max|c0 + A*u|, hoisted to the wrapper

    # ---- Lax-Friedrichs flux splitting ----
    base = half_A * u * u + c0 * u          # A/2 u^2 + c0 u  (CSE'd flux base)
    cu = u_max * u
    f_plus = _weno_z_p(base + cu, n, eps, w_pow)
    f_minus = _weno_z_n(base - cu, n, eps, w_pow)
    fhat = 0.5 * (f_plus + f_minus)         # numerical flux at i+1/2
    lf = fhat - _roll(fhat, 1, n)           # conv_cell [-1,1]: f_{i+1/2} - f_{i-1/2}

    # ---- shared stencil rolls of u (reused by dissipation & dispersion) ----
    um1 = _roll(u, 1, n)
    up1 = _roll(u, -1, n)
    um2 = _roll(u, 2, n)
    up2 = _roll(u, -2, n)
    um3 = _roll(u, 3, n)
    up3 = _roll(u, -3, n)

    # dissipation: nu * conv_cell(CircularPad(1,1) -> conv([-1/dx, 1/dx]))
    #            = (nu/dx) * (u[i+1] - 2 u[i] + u[i-1])
    diss = nu_over_dx * (up1 - 2.0 * u + um1)

    # dispersion: B * (CircularPad(3,3) -> conv([1,-8,13,0,-13,8,-1]/(8 dx^3)))
    disp = disp_coef * (um3 - 8.0 * um2 + 13.0 * um1 - 13.0 * up1 + 8.0 * up2 - up3)

    out_ref[...] = lf * neg_inv_dx + tau + diss - disp


def _vmem_budget_bytes():
    """Usable VMEM budget, derived from the physical capacity of this chip.

    v5e/v6e: 128 MiB physical -> 96 MiB budget; v7x: 64 MiB -> 48 MiB.
    Falls back to a conservative 48 MiB if the query is unavailable.
    """
    phys = 64 * 1024 * 1024
    try:
        info = pltpu.get_tpu_info()
        phys = int(getattr(info, "vmem_capacity_bytes", phys))
    except Exception:
        pass
    return max(16 * 1024 * 1024, min(3 * phys // 4, 96 * 1024 * 1024))


def _pick_batch_tile(bsz, n, vmem_budget):
    """Batch-axis tile size.

    Keeps the full periodic x axis resident (rolls stay lane-local, stores stay
    lane-dense) and bounds tb so that ~40 live f32 (tb, n) blocks (double-
    buffered u/tau/out I/O plus ~30 WENO/stencil temporaries) fit the VMEM
    budget.  When bsz >= 16, tb is capped so the "parallel" batch grid has at
    least two tiles (v7x two-TensorCore split; harmless on v5e/v6e).
    """
    live_blocks = 40
    cap = vmem_budget // (live_blocks * n * 4)
    tb = min(bsz, 512, max(8, int(cap)))
    if bsz >= 16:
        tb = min(tb, max(8, bsz // 2))
    if tb >= bsz:
        return bsz
    return max(8, (tb // 8) * 8)


def kdv_trend(u, tau, *, dx, A, B, c0, nu, eps=1e-6, w_pow=2):
    """u: (bsz, n) float32; tau: (bsz, n) or (1, n)/(n,) if batch-invariant.

    (PyTorch feeds (bsz, 1, n); the singleton channel is squeezed by the caller.)
    """
    bsz, n = u.shape
    u = u.astype(jnp.float32)
    tau = jnp.asarray(tau, jnp.float32)
    if tau.ndim == 1:
        tau = tau[None, :]
    if tau.shape[0] not in (1, bsz) or tau.shape[1] != n:
        raise ValueError(f"tau shape {tau.shape} incompatible with u shape {u.shape}")
    tau_batched = tau.shape[0] == bsz and bsz != 1

    # Hoisted global Lax-Friedrichs wave speed: computed over the whole field
    # in the wrapper so batch tiling / megacore splitting keeps identical
    # numerics; passed as an SMEM scalar.
    u_max = jnp.max(jnp.abs(c0 + A * u)).reshape(1, 1).astype(jnp.float32)

    vmem_budget = _vmem_budget_bytes()
    tb = _pick_batch_tile(bsz, n, vmem_budget)
    grid = (pl.cdiv(bsz, tb),)

    dx = float(dx)
    kernel = functools.partial(
        kdv_trend_kernel,
        n=n,
        half_A=0.5 * float(A),
        c0=float(c0),
        neg_inv_dx=-1.0 / dx,
        nu_over_dx=float(nu) / dx,
        disp_coef=float(B) / (8.0 * dx ** 3),
        eps=float(eps),
        w_pow=w_pow,          # keep as Python int/float; exponent handled at trace time
    )

    if tau_batched:
        tau_spec = pl.BlockSpec((tb, n), lambda i: (i, 0))
    else:
        tau_spec = pl.BlockSpec((1, n), lambda i: (0, 0))

    # ~170 VALU ops + ~8 divides per element; HBM traffic = u + tau + out.
    cost = pl.CostEstimate(
        flops=170 * bsz * n,
        transcendentals=8 * bsz * n,
        bytes_accessed=4 * n * (2 * bsz + tau.shape[0]),
    )

    return pl.pallas_call(
        kernel,
        out_shape=jax.ShapeDtypeStruct((bsz, n), jnp.float32),
        grid=grid,
        in_specs=[
            pl.BlockSpec(memory_space=pltpu.MemorySpace.SMEM),    # u_max scalar
            pl.BlockSpec((tb, n), lambda i: (i, 0)),              # u
            tau_spec,                                             # tau
        ],
        out_specs=pl.BlockSpec((tb, n), lambda i: (i, 0)),
        compiler_params=pltpu.CompilerParams(
            dimension_semantics=("parallel",),     # batch tiles are independent
            vmem_limit_bytes=int(vmem_budget),     # 48 MiB on v7x, 96 MiB on v5e/v6e
        ),
        cost_estimate=cost,
    )(u_max, u, tau)


def kdv_trend_reference(u, tau, *, dx, A, B, c0, nu, eps=1e-6, w_pow=2):
    """Pure-JAX reference mirroring the torch module's formulation literally."""
    def roll(x, s):
        return jnp.roll(x, s, axis=1)

    def weno_p(f):
        fm2, fm1, fp1, fp2 = roll(f, 2), roll(f, 1), roll(f, -1), roll(f, -2)
        b0 = 13.0 / 12.0 * (fm2 - 2 * fm1 + f) ** 2 + 0.25 * (fm2 - 4 * fm1 + 3 * f) ** 2
        b1 = 13.0 / 12.0 * (fm1 - 2 * f + fp1) ** 2 + 0.25 * (fm1 - fp1) ** 2
        b2 = 13.0 / 12.0 * (f - 2 * fp1 + fp2) ** 2 + 0.25 * (3 * f - 4 * fp1 + fp2) ** 2
        t5 = jnp.abs(b0 - b2)
        a0 = 0.1 * (1 + (t5 / (b0 + eps)) ** w_pow)
        a1 = 0.6 * (1 + (t5 / (b1 + eps)) ** w_pow)
        a2 = 0.3 * (1 + (t5 / (b2 + eps)) ** w_pow)
        q0 = (2 * fm2 - 7 * fm1 + 11 * f) / 6.0
        q1 = (-fm1 + 5 * f + 2 * fp1) / 6.0
        q2 = (2 * f + 5 * fp1 - fp2) / 6.0
        return (a0 * q0 + a1 * q1 + a2 * q2) / (a0 + a1 + a2)

    def weno_n(f):
        fm1, fp1, fp2, fp3 = roll(f, 1), roll(f, -1), roll(f, -2), roll(f, -3)
        b0 = 13.0 / 12.0 * (fp3 - 2 * fp2 + fp1) ** 2 + 0.25 * (fp3 - 4 * fp2 + 3 * fp1) ** 2
        b1 = 13.0 / 12.0 * (fp2 - 2 * fp1 + f) ** 2 + 0.25 * (fp2 - f) ** 2
        b2 = 13.0 / 12.0 * (fp1 - 2 * f + fm1) ** 2 + 0.25 * (3 * fp1 - 4 * f + fm1) ** 2
        t5 = jnp.abs(b0 - b2)
        a0 = 0.1 * (1 + (t5 / (b0 + eps)) ** w_pow)
        a1 = 0.6 * (1 + (t5 / (b1 + eps)) ** w_pow)
        a2 = 0.3 * (1 + (t5 / (b2 + eps)) ** w_pow)
        q0 = (2 * fp3 - 7 * fp2 + 11 * fp1) / 6.0
        q1 = (-fp2 + 5 * fp1 + 2 * f) / 6.0
        q2 = (2 * fp1 + 5 * f - fm1) / 6.0
        return (a0 * q0 + a1 * q1 + a2 * q2) / (a0 + a1 + a2)

    u_max = jnp.max(jnp.abs(c0 + A * u))
    flux_p = 0.5 * A * u * u + (c0 + u_max) * u
    flux_n = 0.5 * A * u * u + (c0 - u_max) * u
    fhat = 0.5 * (weno_p(flux_p) + weno_n(flux_n))
    lf = fhat - roll(fhat, 1)
    diss = nu * (roll(u, -1) - 2 * u + roll(u, 1)) / dx
    disp = B * (roll(u, 3) - 8 * roll(u, 2) + 13 * roll(u, 1)
                - 13 * roll(u, -1) + 8 * roll(u, -2) - roll(u, -3)) / (8 * dx ** 3)
    return -lf / dx + tau + diss - disp


if __name__ == "__main__":
    # Deterministic "module constructor" parameters (synthetic, no checkpoint).
    shape = (128,)                 # grid points along 'x' (lane multiple)
    lengths = (2.0,)               # domain length
    dx = lengths[0] / shape[0]
    A_const, B_const, c0_const, nu_const = 1.0, 0.022 ** 2, 1.0, 0.01

    bsz, n = 8, shape[0]
    key = jax.random.PRNGKey(0)
    k_u, _ = jax.random.split(key)

    # Prognostic field u, shape (bsz, 1, n) in torch NCW -> squeeze channel.
    u_ncw = 0.5 * jax.random.normal(k_u, (bsz, 1, n), dtype=jnp.float32)
    u = u_ncw[:, 0, :]

    # Exogenous forcing tau(inputs): deterministic, batch-invariant sinusoidal
    # forcing, passed as (1, n) so the kernel DMAs it once per grid step.
    x_coord = (jnp.arange(n, dtype=jnp.float32) + 0.5) * dx
    tau = (0.01 * jnp.sin(2.0 * jnp.pi * x_coord / lengths[0]))[None, :].astype(jnp.float32)

    trend_u = kdv_trend(u, tau, dx=dx, A=A_const, B=B_const,
                        c0=c0_const, nu=nu_const)
    jax.block_until_ready(trend_u)
    assert trend_u.shape == (bsz, n) and trend_u.dtype == jnp.float32
    assert bool(jnp.all(jnp.isfinite(trend_u)))

    # Validate against the pure-JAX reference. With exact divisions in the
    # kernel's WENO weights, the only differences are float32 reassociation
    # from the undivided-difference CSE, so the tolerance is tight.
    ref = kdv_trend_reference(u, tau, dx=dx, A=A_const, B=B_const,
                              c0=c0_const, nu=nu_const)
    err = float(jnp.max(jnp.abs(trend_u - ref)))
    scale = float(jnp.max(jnp.abs(ref)))
    assert err <= 3e-4 * max(1.0, scale), (err, scale)

    print("KERNEL_OK")
</pallas_src>

<mosaic_0001>
module attributes {stable_mosaic.version = 11 : i64} {
  func.func @kdv_trend_kernel(%arg0: i32, %arg1: memref<1x1xf32, #tpu.memory_space<smem>>, %arg2: memref<8x128xf32, #tpu.memory_space<vmem>>, %arg3: memref<1x128xf32, #tpu.memory_space<vmem>>, %arg4: memref<8x128xf32, #tpu.memory_space<vmem>>) attributes {dimension_semantics = [#tpu.dimension_semantics<parallel>], iteration_bounds = array<i64: 1>, scalar_prefetch = 0 : i64, scratch_operands = 0 : i64, tpu.core_type = #tpu.core_type<tc>, window_params = [{transform_indices = @transform_0, window_bounds = array<i64: 1, 1>}, {transform_indices = @transform_1, window_bounds = array<i64: 8, 128>}, {pipeline_mode = #tpu.pipeline_mode<synchronous>, transform_indices = @transform_2, window_bounds = array<i64: 1, 128>}, {transform_indices = @transform_3, window_bounds = array<i64: 8, 128>}]} {
    %c0 = arith.constant 0 : index
    %c0_0 = arith.constant 0 : index
    %0 = vector.load %arg2[%c0, %c0_0] : memref<8x128xf32, #tpu.memory_space<vmem>>, vector<8x128xf32>
    %c0_1 = arith.constant 0 : index
    %c0_2 = arith.constant 0 : index
    %1 = vector.load %arg3[%c0_1, %c0_2] : memref<1x128xf32, #tpu.memory_space<vmem>>, vector<1x128xf32>
    %c0_3 = arith.constant 0 : index
    %c0_4 = arith.constant 0 : index
    %2 = memref.load %arg1[%c0_3, %c0_4] : memref<1x1xf32, #tpu.memory_space<smem>>
    %cst = arith.constant 5.000000e-01 : f32
    %3 = vector.broadcast %cst : f32 to vector<8x128xf32>
    %4 = arith.mulf %3, %0 : vector<8x128xf32>
    %5 = arith.mulf %4, %0 : vector<8x128xf32>
    %cst_5 = arith.constant 1.000000e+00 : f32
    %6 = vector.broadcast %cst_5 : f32 to vector<8x128xf32>
    %7 = arith.mulf %6, %0 : vector<8x128xf32>
    %8 = arith.addf %5, %7 : vector<8x128xf32>
    %9 = vector.broadcast %2 : f32 to vector<8x128xf32>
    %10 = arith.mulf %9, %0 : vector<8x128xf32>
    %11 = arith.addf %8, %10 : vector<8x128xf32>
    %c2_i32 = arith.constant 2 : i32
    %12 = tpu.dynamic_rotate %11 by %c2_i32 dim 1 : vector<8x128xf32>, i32 -> vector<8x128xf32>
    %c1_i32 = arith.constant 1 : i32
    %13 = tpu.dynamic_rotate %11 by %c1_i32 dim 1 : vector<8x128xf32>, i32 -> vector<8x128xf32>
    %c127_i32 = arith.constant 127 : i32
    %14 = tpu.dynamic_rotate %11 by %c127_i32 dim 1 : vector<8x128xf32>, i32 -> vector<8x128xf32>
    %c126_i32 = arith.constant 126 : i32
    %15 = tpu.dynamic_rotate %11 by %c126_i32 dim 1 : vector<8x128xf32>, i32 -> vector<8x128xf32>
    %16 = arith.subf %12, %13 : vector<8x128xf32>
    %17 = arith.subf %13, %11 : vector<8x128xf32>
    %18 = arith.subf %11, %14 : vector<8x128xf32>
    %19 = arith.subf %14, %15 : vector<8x128xf32>
    %20 = arith.subf %16, %17 : vector<8x128xf32>
    %21 = arith.subf %17, %18 : vector<8x128xf32>
    %22 = arith.subf %18, %19 : vector<8x128xf32>
    %cst_6 = arith.constant 3.000000e+00 : f32
    %23 = vector.broadcast %cst_6 : f32 to vector<8x128xf32>
    %24 = arith.mulf %23, %17 : vector<8x128xf32>
    %25 = arith.subf %16, %24 : vector<8x128xf32>
    %26 = arith.addf %17, %18 : vector<8x128xf32>
    %cst_7 = arith.constant 3.000000e+00 : f32
    %27 = vector.broadcast %cst_7 : f32 to vector<8x128xf32>
    %28 = arith.mulf %27, %18 : vector<8x128xf32>
    %29 = arith.subf %28, %19 : vector<8x128xf32>
    %cst_8 = arith.constant 1.08333337 : f32
    %30 = vector.broadcast %cst_8 : f32 to vector<8x128xf32>
    %31 = arith.mulf %30, %20 : vector<8x128xf32>
    %32 = arith.mulf %31, %20 : vector<8x128xf32>
    %cst_9 = arith.constant 2.500000e-01 : f32
    %33 = vector.broadcast %cst_9 : f32 to vector<8x128xf32>
    %34 = arith.mulf %33, %25 : vector<8x128xf32>
    %35 = arith.mulf %34, %25 : vector<8x128xf32>
    %36 = arith.addf %32, %35 : vector<8x128xf32>
    %cst_10 = arith.constant 1.08333337 : f32
    %37 = vector.broadcast %cst_10 : f32 to vector<8x128xf32>
    %38 = arith.mulf %37, %21 : vector<8x128xf32>
    %39 = arith.mulf %38, %21 : vector<8x128xf32>
    %cst_11 = arith.constant 2.500000e-01 : f32
    %40 = vector.broadcast %cst_11 : f32 to vector<8x128xf32>
    %41 = arith.mulf %40, %26 : vector<8x128xf32>
    %42 = arith.mulf %41, %26 : vector<8x128xf32>
    %43 = arith.addf %39, %42 : vector<8x128xf32>
    %cst_12 = arith.constant 1.08333337 : f32
    %44 = vector.broadcast %cst_12 : f32 to vector<8x128xf32>
    %45 = arith.mulf %44, %22 : vector<8x128xf32>
    %46 = arith.mulf %45, %22 : vector<8x128xf32>
    %cst_13 = arith.constant 2.500000e-01 : f32
    %47 = vector.broadcast %cst_13 : f32 to vector<8x128xf32>
    %48 = arith.mulf %47, %29 : vector<8x128xf32>
    %49 = arith.mulf %48, %29 : vector<8x128xf32>
    %50 = arith.addf %46, %49 : vector<8x128xf32>
    %51 = arith.subf %36, %50 : vector<8x128xf32>
    %52 = math.absf %51 : vector<8x128xf32>
    %cst_14 = arith.constant 9.99999997E-7 : f32
    %53 = vector.broadcast %cst_14 : f32 to vector<8x128xf32>
    %54 = arith.addf %36, %53 : vector<8x128xf32>
    %55 = arith.divf %52, %54 : vector<8x128xf32>
    %56 = arith.mulf %55, %55 : vector<8x128xf32>
    %cst_15 = arith.constant 1.000000e+00 : f32
    %57 = vector.broadcast %cst_15 : f32 to vector<8x128xf32>
    %58 = arith.addf %57, %56 : vector<8x128xf32>
    %cst_16 = arith.constant 1.000000e-01 : f32
    %59 = vector.broadcast %cst_16 : f32 to vector<8x128xf32>
    %60 = arith.mulf %59, %58 : vector<8x128xf32>
    %cst_17 = arith.constant 9.99999997E-7 : f32
    %61 = vector.broadcast %cst_17 : f32 to vector<8x128xf32>
    %62 = arith.addf %43, %61 : vector<8x128xf32>
    %63 = arith.divf %52, %62 : vector<8x128xf32>
    %64 = arith.mulf %63, %63 : vector<8x128xf32>
    %cst_18 = arith.constant 1.000000e+00 : f32
    %65 = vector.broadcast %cst_18 : f32 to vector<8x128xf32>
    %66 = arith.addf %65, %64 : vector<8x128xf32>
    %cst_19 = arith.constant 6.000000e-01 : f32
    %67 = vector.broadcast %cst_19 : f32 to vector<8x128xf32>
    %68 = arith.mulf %67, %66 : vector<8x128xf32>
    %cst_20 = arith.constant 9.99999997E-7 : f32
    %69 = vector.broadcast %cst_20 : f32 to vector<8x128xf32>
    %70 = arith.addf %50, %69 : vector<8x128xf32>
    %71 = arith.divf %52, %70 : vector<8x128xf32>
    %72 = arith.mulf %71, %71 : vector<8x128xf32>
    %cst_21 = arith.constant 1.000000e+00 : f32
    %73 = vector.broadcast %cst_21 : f32 to vector<8x128xf32>
    %74 = arith.addf %73, %72 : vector<8x128xf32>
    %cst_22 = arith.constant 3.000000e-01 : f32
    %75 = vector.broadcast %cst_22 : f32 to vector<8x128xf32>
    %76 = arith.mulf %75, %74 : vector<8x128xf32>
    %cst_23 = arith.constant 2.000000e+00 : f32
    %77 = vector.broadcast %cst_23 : f32 to vector<8x128xf32>
    %78 = arith.mulf %77, %16 : vector<8x128xf32>
    %cst_24 = arith.constant 5.000000e+00 : f32
    %79 = vector.broadcast %cst_24 : f32 to vector<8x128xf32>
    %80 = arith.mulf %79, %17 : vector<8x128xf32>
    %81 = arith.subf %78, %80 : vector<8x128xf32>
    %cst_25 = arith.constant 0.166666672 : f32
    %82 = vector.broadcast %cst_25 : f32 to vector<8x128xf32>
    %83 = arith.mulf %81, %82 : vector<8x128xf32>
    %84 = arith.addf %11, %83 : vector<8x128xf32>
    %cst_26 = arith.constant 2.000000e+00 : f32
    %85 = vector.broadcast %cst_26 : f32 to vector<8x128xf32>
    %86 = arith.mulf %85, %18 : vector<8x128xf32>
    %87 = arith.addf %17, %86 : vector<8x128xf32>
    %cst_27 = arith.constant 0.166666672 : f32
    %88 = vector.broadcast %cst_27 : f32 to vector<8x128xf32>
    %89 = arith.mulf %87, %88 : vector<8x128xf32>
    %90 = arith.subf %11, %89 : vector<8x128xf32>
    %cst_28 = arith.constant 4.000000e+00 : f32
    %91 = vector.broadcast %cst_28 : f32 to vector<8x128xf32>
    %92 = arith.mulf %91, %18 : vector<8x128xf32>
    %93 = arith.subf %19, %92 : vector<8x128xf32>
    %cst_29 = arith.constant 0.166666672 : f32
    %94 = vector.broadcast %cst_29 : f32 to vector<8x128xf32>
    %95 = arith.mulf %93, %94 : vector<8x128xf32>
    %96 = arith.addf %11, %95 : vector<8x128xf32>
    %97 = arith.mulf %60, %84 : vector<8x128xf32>
    %98 = arith.mulf %68, %90 : vector<8x128xf32>
    %99 = arith.addf %97, %98 : vector<8x128xf32>
    %100 = arith.mulf %76, %96 : vector<8x128xf32>
    %101 = arith.addf %99, %100 : vector<8x128xf32>
    %102 = arith.addf %60, %68 : vector<8x128xf32>
    %103 = arith.addf %102, %76 : vector<8x128xf32>
    %104 = arith.divf %101, %103 : vector<8x128xf32>
    %105 = arith.subf %8, %10 : vector<8x128xf32>
    %c1_i32_30 = arith.constant 1 : i32
    %106 = tpu.dynamic_rotate %105 by %c1_i32_30 dim 1 : vector<8x128xf32>, i32 -> vector<8x128xf32>
    %c127_i32_31 = arith.constant 127 : i32
    %107 = tpu.dynamic_rotate %105 by %c127_i32_31 dim 1 : vector<8x128xf32>, i32 -> vector<8x128xf32>
    %c126_i32_32 = arith.constant 126 : i32
    %108 = tpu.dynamic_rotate %105 by %c126_i32_32 dim 1 : vector<8x128xf32>, i32 -> vector<8x128xf32>
    %c125_i32 = arith.constant 125 : i32
    %109 = tpu.dynamic_rotate %105 by %c125_i32 dim 1 : vector<8x128xf32>, i32 -> vector<8x128xf32>
    %110 = arith.subf %109, %108 : vector<8x128xf32>
    %111 = arith.subf %108, %107 : vector<8x128xf32>
    %112 = arith.subf %107, %105 : vector<8x128xf32>
    %113 = arith.subf %105, %106 : vector<8x128xf32>
    %114 = arith.subf %110, %111 : vector<8x128xf32>
    %115 = arith.subf %111, %112 : vector<8x128xf32>
    %116 = arith.subf %112, %113 : vector<8x128xf32>
    %cst_33 = arith.constant 3.000000e+00 : f32
    %117 = vector.broadcast %cst_33 : f32 to vector<8x128xf32>
    %118 = arith.mulf %117, %111 : vector<8x128xf32>
    %119 = arith.subf %110, %118 : vector<8x128xf32>
    %120 = arith.addf %111, %112 : vector<8x128xf32>
    %cst_34 = arith.constant 3.000000e+00 : f32
    %121 = vector.broadcast %cst_34 : f32 to vector<8x128xf32>
    %122 = arith.mulf %121, %112 : vector<8x128xf32>
    %123 = arith.subf %122, %113 : vector<8x128xf32>
    %cst_35 = arith.constant 1.08333337 : f32
    %124 = vector.broadcast %cst_35 : f32 to vector<8x128xf32>
    %125 = arith.mulf %124, %114 : vector<8x128xf32>
    %126 = arith.mulf %125, %114 : vector<8x128xf32>
    %cst_36 = arith.constant 2.500000e-01 : f32
    %127 = vector.broadcast %cst_36 : f32 to vector<8x128xf32>
    %128 = arith.mulf %127, %119 : vector<8x128xf32>
    %129 = arith.mulf %128, %119 : vector<8x128xf32>
    %130 = arith.addf %126, %129 : vector<8x128xf32>
    %cst_37 = arith.constant 1.08333337 : f32
    %131 = vector.broadcast %cst_37 : f32 to vector<8x128xf32>
    %132 = arith.mulf %131, %115 : vector<8x128xf32>
    %133 = arith.mulf %132, %115 : vector<8x128xf32>
    %cst_38 = arith.constant 2.500000e-01 : f32
    %134 = vector.broadcast %cst_38 : f32 to vector<8x128xf32>
    %135 = arith.mulf %134, %120 : vector<8x128xf32>
    %136 = arith.mulf %135, %120 : vector<8x128xf32>
    %137 = arith.addf %133, %136 : vector<8x128xf32>
    %cst_39 = arith.constant 1.08333337 : f32
    %138 = vector.broadcast %cst_39 : f32 to vector<8x128xf32>
    %139 = arith.mulf %138, %116 : vector<8x128xf32>
    %140 = arith.mulf %139, %116 : vector<8x128xf32>
    %cst_40 = arith.constant 2.500000e-01 : f32
    %141 = vector.broadcast %cst_40 : f32 to vector<8x128xf32>
    %142 = arith.mulf %141, %123 : vector<8x128xf32>
    %143 = arith.mulf %142, %123 : vector<8x128xf32>
    %144 = arith.addf %140, %143 : vector<8x128xf32>
    %145 = arith.subf %130, %144 : vector<8x128xf32>
    %146 = math.absf %145 : vector<8x128xf32>
    %cst_41 = arith.constant 9.99999997E-7 : f32
    %147 = vector.broadcast %cst_41 : f32 to vector<8x128xf32>
    %148 = arith.addf %130, %147 : vector<8x128xf32>
    %149 = arith.divf %146, %148 : vector<8x128xf32>
    %150 = arith.mulf %149, %149 : vector<8x128xf32>
    %cst_42 = arith.constant 1.000000e+00 : f32
    %151 = vector.broadcast %cst_42 : f32 to vector<8x128xf32>
    %152 = arith.addf %151, %150 : vector<8x128xf32>
    %cst_43 = arith.constant 1.000000e-01 : f32
    %153 = vector.broadcast %cst_43 : f32 to vector<8x128xf32>
    %154 = arith.mulf %153, %152 : vector<8x128xf32>
    %cst_44 = arith.constant 9.99999997E-7 : f32
    %155 = vector.broadcast %cst_44 : f32 to vector<8x128xf32>
    %156 = arith.addf %137, %155 : vector<8x128xf32>
    %157 = arith.divf %146, %156 : vector<8x128xf32>
    %158 = arith.mulf %157, %157 : vector<8x128xf32>
    %cst_45 = arith.constant 1.000000e+00 : f32
    %159 = vector.broadcast %cst_45 : f32 to vector<8x128xf32>
    %160 = arith.addf %159, %158 : vector<8x128xf32>
    %cst_46 = arith.constant 6.000000e-01 : f32
    %161 = vector.broadcast %cst_46 : f32 to vector<8x128xf32>
    %162 = arith.mulf %161, %160 : vector<8x128xf32>
    %cst_47 = arith.constant 9.99999997E-7 : f32
    %163 = vector.broadcast %cst_47 : f32 to vector<8x128xf32>
    %164 = arith.addf %144, %163 : vector<8x128xf32>
    %165 = arith.divf %146, %164 : vector<8x128xf32>
    %166 = arith.mulf %165, %165 : vector<8x128xf32>
    %cst_48 = arith.constant 1.000000e+00 : f32
    %167 = vector.broadcast %cst_48 : f32 to vector<8x128xf32>
    %168 = arith.addf %167, %166 : vector<8x128xf32>
    %cst_49 = arith.constant 3.000000e-01 : f32
    %169 = vector.broadcast %cst_49 : f32 to vector<8x128xf32>
    %170 = arith.mulf %169, %168 : vector<8x128xf32>
    %cst_50 = arith.constant 2.000000e+00 : f32
    %171 = vector.broadcast %cst_50 : f32 to vector<8x128xf32>
    %172 = arith.mulf %171, %110 : vector<8x128xf32>
    %cst_51 = arith.constant 5.000000e+00 : f32
    %173 = vector.broadcast %cst_51 : f32 to vector<8x128xf32>
    %174 = arith.mulf %173, %111 : vector<8x128xf32>
    %175 = arith.subf %172, %174 : vector<8x128xf32>
    %cst_52 = arith.constant 0.166666672 : f32
    %176 = vector.broadcast %cst_52 : f32 to vector<8x128xf32>
    %177 = arith.mulf %175, %176 : vector<8x128xf32>
    %178 = arith.addf %107, %177 : vector<8x128xf32>
    %cst_53 = arith.constant 2.000000e+00 : f32
    %179 = vector.broadcast %cst_53 : f32 to vector<8x128xf32>
    %180 = arith.mulf %179, %112 : vector<8x128xf32>
    %181 = arith.addf %111, %180 : vector<8x128xf32>
    %cst_54 = arith.constant 0.166666672 : f32
    %182 = vector.broadcast %cst_54 : f32 to vector<8x128xf32>
    %183 = arith.mulf %181, %182 : vector<8x128xf32>
    %184 = arith.subf %107, %183 : vector<8x128xf32>
    %cst_55 = arith.constant 4.000000e+00 : f32
    %185 = vector.broadcast %cst_55 : f32 to vector<8x128xf32>
    %186 = arith.mulf %185, %112 : vector<8x128xf32>
    %187 = arith.subf %113, %186 : vector<8x128xf32>
    %cst_56 = arith.constant 0.166666672 : f32
    %188 = vector.broadcast %cst_56 : f32 to vector<8x128xf32>
    %189 = arith.mulf %187, %188 : vector<8x128xf32>
    %190 = arith.addf %107, %189 : vector<8x128xf32>
    %191 = arith.mulf %154, %178 : vector<8x128xf32>
    %192 = arith.mulf %162, %184 : vector<8x128xf32>
    %193 = arith.addf %191, %192 : vector<8x128xf32>
    %194 = arith.mulf %170, %190 : vector<8x128xf32>
    %195 = arith.addf %193, %194 : vector<8x128xf32>
    %196 = arith.addf %154, %162 : vector<8x128xf32>
    %197 = arith.addf %196, %170 : vector<8x128xf32>
    %198 = arith.divf %195, %197 : vector<8x128xf32>
    %199 = arith.addf %104, %198 : vector<8x128xf32>
    %cst_57 = arith.constant 5.000000e-01 : f32
    %200 = vector.broadcast %cst_57 : f32 to vector<8x128xf32>
    %201 = arith.mulf %200, %199 : vector<8x128xf32>
    %c1_i32_58 = arith.constant 1 : i32
    %202 = tpu.dynamic_rotate %201 by %c1_i32_58 dim 1 : vector<8x128xf32>, i32 -> vector<8x128xf32>
    %203 = arith.subf %201, %202 : vector<8x128xf32>
    %c1_i32_59 = arith.constant 1 : i32
    %204 = tpu.dynamic_rotate %0 by %c1_i32_59 dim 1 : vector<8x128xf32>, i32 -> vector<8x128xf32>
    %c127_i32_60 = arith.constant 127 : i32
    %205 = tpu.dynamic_rotate %0 by %c127_i32_60 dim 1 : vector<8x128xf32>, i32 -> vector<8x128xf32>
    %c2_i32_61 = arith.constant 2 : i32
    %206 = tpu.dynamic_rotate %0 by %c2_i32_61 dim 1 : vector<8x128xf32>, i32 -> vector<8x128xf32>
    %c126_i32_62 = arith.constant 126 : i32
    %207 = tpu.dynamic_rotate %0 by %c126_i32_62 dim 1 : vector<8x128xf32>, i32 -> vector<8x128xf32>
    %c3_i32 = arith.constant 3 : i32
    %208 = tpu.dynamic_rotate %0 by %c3_i32 dim 1 : vector<8x128xf32>, i32 -> vector<8x128xf32>
    %c125_i32_63 = arith.constant 125 : i32
    %209 = tpu.dynamic_rotate %0 by %c125_i32_63 dim 1 : vector<8x128xf32>, i32 -> vector<8x128xf32>
    %cst_64 = arith.constant 2.000000e+00 : f32
    %210 = vector.broadcast %cst_64 : f32 to vector<8x128xf32>
    %211 = arith.mulf %210, %0 : vector<8x128xf32>
    %212 = arith.subf %205, %211 : vector<8x128xf32>
    %213 = arith.addf %212, %204 : vector<8x128xf32>
    %cst_65 = arith.constant 6.400000e-01 : f32
    %214 = vector.broadcast %cst_65 : f32 to vector<8x128xf32>
    %215 = arith.mulf %214, %213 : vector<8x128xf32>
    %cst_66 = arith.constant 8.000000e+00 : f32
    %216 = vector.broadcast %cst_66 : f32 to vector<8x128xf32>
    %217 = arith.mulf %216, %206 : vector<8x128xf32>
    %218 = arith.subf %208, %217 : vector<8x128xf32>
    %cst_67 = arith.constant 1.300000e+01 : f32
    %219 = vector.broadcast %cst_67 : f32 to vector<8x128xf32>
    %220 = arith.mulf %219, %204 : vector<8x128xf32>
    %221 = arith.addf %218, %220 : vector<8x128xf32>
    %cst_68 = arith.constant 1.300000e+01 : f32
    %222 = vector.broadcast %cst_68 : f32 to vector<8x128xf32>
    %223 = arith.mulf %222, %205 : vector<8x128xf32>
    %224 = arith.subf %221, %223 : vector<8x128xf32>
    %cst_69 = arith.constant 8.000000e+00 : f32
    %225 = vector.broadcast %cst_69 : f32 to vector<8x128xf32>
    %226 = arith.mulf %225, %207 : vector<8x128xf32>
    %227 = arith.addf %224, %226 : vector<8x128xf32>
    %228 = arith.subf %227, %209 : vector<8x128xf32>
    %cst_70 = arith.constant 15.8597116 : f32
    %229 = vector.broadcast %cst_70 : f32 to vector<8x128xf32>
    %230 = arith.mulf %229, %228 : vector<8x128xf32>
    %cst_71 = arith.constant -6.400000e+01 : f32
    %231 = vector.broadcast %cst_71 : f32 to vector<8x128xf32>
    %232 = arith.mulf %203, %231 : vector<8x128xf32>
    %233 = vector.broadcast %1 : vector<1x128xf32> to vector<8x128xf32>
    %234 = arith.addf %232, %233 : vector<8x128xf32>
    %235 = arith.addf %234, %215 : vector<8x128xf32>
    %236 = arith.subf %235, %230 : vector<8x128xf32>
    %c0_72 = arith.constant 0 : index
    %c0_73 = arith.constant 0 : index
    %237 = vector.load %arg4[%c0_72, %c0_73] : memref<8x128xf32, #tpu.memory_space<vmem>>, vector<8x128xf32>
    tpu.vector_store %arg4[%c0_72, %c0_73], %236 {strides = array<i32>} : memref<8x128xf32, #tpu.memory_space<vmem>>, vector<8x128xf32>,
    return
  }
  func.func @transform_0(%arg0: i32) -> (i32, i32) {
    %c0_i32 = arith.constant 0 : i32
    %c0_i32_0 = arith.constant 0 : i32
    %c0_i32_1 = arith.constant 0 : i32
    return %c0_i32, %c0_i32_0 : i32, i32
  }
  func.func @transform_1(%arg0: i32) -> (i32, i32) {
    %c0_i32 = arith.constant 0 : i32
    %c0_i32_0 = arith.constant 0 : i32
    return %arg0, %c0_i32 : i32, i32
  }
  func.func @transform_2(%arg0: i32) -> (i32, i32) {
    %c0_i32 = arith.constant 0 : i32
    %c0_i32_0 = arith.constant 0 : i32
    %c0_i32_1 = arith.constant 0 : i32
    return %c0_i32, %c0_i32_0 : i32, i32
  }
  func.func @transform_3(%arg0: i32) -> (i32, i32) {
    %c0_i32 = arith.constant 0 : i32
    %c0_i32_0 = arith.constant 0 : i32
    return %arg0, %c0_i32 : i32, i32
  }
}

</mosaic_0001>

<llo_original>
// kernel: tpu_custom_call.1
$region0: #{tpu_custom_call.1}
  #allocation0 [shape = 'u32[]', space=smem, size = 0x4, offset = 0x4, fixed_abs, tag = 'smem constant byte address 0x4 - core index']
  #allocation1 [shape = 'u32[72,128]{1,0:T(1,128)}', space=vmem, size = 0x9000, scoped, tag = 'internal scratch']
  #allocation2 [shape = 'f32[1,1]{1,0:T(1,128)S(6)}', space=smem, size = 0x200, scoped, tag = 'scoped memory for tpu_custom_call.1']
  %s0 = inlined_call_operand.<no memory space> [shape: f32[1,1], index: 0, kind: input, shape index: {}]
  %s1 = inlined_call_operand.hbm [shape: f32[8,128], index: 1, kind: input, shape index: {}]
  %s2 = inlined_call_operand.vmem [shape: f32[1,128], index: 2, kind: input, shape index: {}]
  %s3 = inlined_call_operand.hbm [shape: f32[8,128], index: 3, kind: output, shape index: {}]
  %s4 = sld [smem:[#allocation0]]
  $region26: #{tpu_custom_call.1} parent=0
    _
  %s6 = ssub.s32 1, %s4
  %s7 = scalar_select 0, %s6, %s4
  %8 = sst [smem:[#allocation2]] %s0
  $region1: #{tpu_custom_call.1} parent=0
    #allocation3 [shape = 'u8[4096]{0}', space=vmem, size = 0x1000, scoped, tag = 'input window, operand 1, single buffered']
    #allocation4 [shape = 's32[1]{0}', space=sflag, size = 0x4, scoped, tag = 'scoped memory for tpu_custom_call.1']
    #allocation5 [shape = 's32[1]{0}', space=sflag, size = 0x4, scoped, tag = 'scoped memory for tpu_custom_call.1']
    #allocation6 [shape = 'u8[4096]{0}', space=vmem, size = 0x1000, scoped, tag = 'output window, operand 0, single buffered']
    %9 = vsyncpa [#allocation4], 0
    %10 = vsyncpa [#allocation5], 0
    // Predicated region
    $region2: #{tpu_custom_call.1} parent=1 // pred_check
      _
    $region3: #{tpu_custom_call.1} parent=1 // pred_check_branch
      %12 = sbr.rel (0) target = $region5
    $region4: #{tpu_custom_call.1} parent=1 // pred_region
      _
    $region5: #{tpu_custom_call.1} parent=1 // pred_fallthru
      _
    // Predicated region
    $region6: #{tpu_custom_call.1} parent=1 // pred_check
      _
    $region7: #{tpu_custom_call.1} parent=1 // pred_check_branch
      %14 = sbr.rel (0) target = $region9
    $region8: #{tpu_custom_call.1} parent=1 // pred_region
      %16 = vsyncadd [#allocation4], 0
      %s18 = sshll.u32 %s1, 4
      %s19 = int_to_ptr.hbm [resolvable:$true] %s18
      %s20 = sshll.u32 [#allocation3], 4
      %s21 = int_to_ptr.vmem [resolvable:$true] %s20
      %23 = dma.hbm_to_vmem [thread:$0]  %s19, 128, %s21, [#allocation4]
    $region9: #{tpu_custom_call.1} parent=1 // pred_fallthru
      _
    // Predicated region
    $region10: #{tpu_custom_call.1} parent=1 // pred_check
      _
    $region11: #{tpu_custom_call.1} parent=1 // pred_check_branch
      %25 = sbr.rel (0) target = $region13
    $region12: #{tpu_custom_call.1} parent=1 // pred_region
      _
    $region13: #{tpu_custom_call.1} parent=1 // pred_fallthru
      _
    // Predicated region
    $region14: #{tpu_custom_call.1} parent=1 // pred_check
      _
    $region15: #{tpu_custom_call.1} parent=1 // pred_check_branch
      %27 = sbr.rel (0) target = $region17
    $region16: #{tpu_custom_call.1} parent=1 // pred_region
      %29 = dma.done [#allocation4], 128
    $region17: #{tpu_custom_call.1} parent=1 // pred_fallthru
      _
    %v30 = vld [vmem:[#allocation3] sm:$0xff]
    %v31 = vld [vmem:[%s2] sm:$0x1]
    %s32 = sld [smem:[#allocation2]]
    %v33 = vmul.f32 %v30, 0.5
    %v34 = vmul.f32 %v33, %v30
    %v35 = vadd.f32 %v34, %v30
    %v36 = vstv %s32
    %v37 = vmul.f32 %v36, %v30
    %v38 = vadd.f32 %v35, %v37
    %39 = vrot.lane.b32.xlu0 %v38, 2
    %v40 = vpop.permute.xlu0 %39
    %41 = vrot.lane.b32.xlu0 %v38, 1
    %v42 = vpop.permute.xlu0 %41
    %43 = vrot.lane.b32.xlu0 %v38, 127
    %v44 = vpop.permute.xlu0 %43
    %45 = vrot.lane.b32.xlu0 %v38, 126
    %v46 = vpop.permute.xlu0 %45
    %v47 = vsub.f32 %v40, %v42
    %v48 = vsub.f32 %v42, %v38
    %v49 = vsub.f32 %v38, %v44
    %v50 = vsub.f32 %v44, %v46
    %v51 = vsub.f32 %v47, %v48
    %v52 = vsub.f32 %v48, %v49
    %v53 = vsub.f32 %v49, %v50
    %v54 = vmul.f32 %v48, 3.0
    %v55 = vsub.f32 %v47, %v54
    %v56 = vadd.f32 %v48, %v49
    %v57 = vmul.f32 %v49, 3.0
    %v58 = vsub.f32 %v57, %v50
    %v59 = vmul.f32 %v51, 1.0833334
    %v60 = vmul.f32 %v59, %v51
    %v61 = vmul.f32 %v55, 0.25
    %v62 = vmul.f32 %v61, %v55
    %v63 = vadd.f32 %v60, %v62
    %v64 = vmul.f32 %v52, 1.0833334
    %v65 = vmul.f32 %v64, %v52
    %v66 = vmul.f32 %v56, 0.25
    %v67 = vmul.f32 %v66, %v56
    %v68 = vadd.f32 %v65, %v67
    %v69 = vmul.f32 %v53, 1.0833334
    %v70 = vmul.f32 %v69, %v53
    %v71 = vmul.f32 %v58, 0.25
    %v72 = vmul.f32 %v71, %v58
    %v73 = vadd.f32 %v70, %v72
    %v74 = vsub.f32 %v63, %v73
    %v75 = vand.u32 2147483647, %v74
    %v76 = vadd.f32 %v63, 1e-06
    %v77 = vrcp.pop %v76
    %v78 = vmul.f32 %v76, %v77
    %v79 = vsub.f32 1.0, %v78
    %v80 = vmul.f32 %v77, %v79
    %v81 = vadd.f32 %v77, %v80
    %vm82 = vweird.f32 %v76
    %vm83 = vweird.f32 %v77
    %vm84 = vmor %vm82, %vm83
    %v85 = vsel %vm84, %v77, %v81
    %v86 = vand.u32 2147483647, %v76
    %vm87 = vcmp.eq.f32.partialorder %v86, 8.507059e+37
    %v88 = vand.u32 %v76, 2147483648
    %v89 = vor.u32 1.1754944e-38, %v88
    %v90 = vsel %vm87, %v89, %v85
    %v91 = vmul.f32 %v75, %v90
    %v92 = vmul.f32 %v91, %v91
    %v93 = vadd.f32 %v92, 1.0
    %v94 = vmul.f32 %v93, 0.1
    %v95 = vadd.f32 %v68, 1e-06
    %v96 = vrcp.pop %v95
    %v97 = vmul.f32 %v95, %v96
    %v98 = vsub.f32 1.0, %v97
    %v99 = vmul.f32 %v96, %v98
    %v100 = vadd.f32 %v96, %v99
    %vm101 = vweird.f32 %v95
    %vm102 = vweird.f32 %v96
    %vm103 = vmor %vm101, %vm102
    %v104 = vsel %vm103, %v96, %v100
    %v105 = vand.u32 2147483647, %v95
    %vm106 = vcmp.eq.f32.partialorder %v105, 8.507059e+37
    %v107 = vand.u32 %v95, 2147483648
    %v108 = vor.u32 1.1754944e-38, %v107
    %v109 = vsel %vm106, %v108, %v104
    %v110 = vmul.f32 %v75, %v109
    %v111 = vmul.f32 %v110, %v110
    %v112 = vadd.f32 %v111, 1.0
    %v113 = vmul.f32 %v112, 0.6
    %v114 = vadd.f32 %v73, 1e-06
    %v115 = vrcp.pop %v114
    %v116 = vmul.f32 %v114, %v115
    %v117 = vsub.f32 1.0, %v116
    %v118 = vmul.f32 %v115, %v117
    %v119 = vadd.f32 %v115, %v118
    %vm120 = vweird.f32 %v114
    %vm121 = vweird.f32 %v115
    %vm122 = vmor %vm120, %vm121
    %v123 = vsel %vm122, %v115, %v119
    %v124 = vand.u32 2147483647, %v114
    %vm125 = vcmp.eq.f32.partialorder %v124, 8.507059e+37
    %v126 = vand.u32 %v114, 2147483648
    %v127 = vor.u32 1.1754944e-38, %v126
    %v128 = vsel %vm125, %v127, %v123
    %v129 = vmul.f32 %v75, %v128
    %v130 = vmul.f32 %v129, %v129
    %v131 = vadd.f32 %v130, 1.0
    %v132 = vmul.f32 %v131, 0.3
    %v133 = vmul.f32 %v47, 2.0
    %v134 = vmul.f32 %v48, 5.0
    %v135 = vsub.f32 %v133, %v134
    %v136 = vmul.f32 %v135, 0.16666667
    %v137 = vadd.f32 %v38, %v136
    %v138 = vmul.f32 %v49, 2.0
    %v139 = vadd.f32 %v48, %v138
    %v140 = vmul.f32 %v139, 0.16666667
    %v141 = vsub.f32 %v38, %v140
    %v142 = vmul.f32 %v49, 4.0
    %v143 = vsub.f32 %v50, %v142
    %v144 = vmul.f32 %v143, 0.16666667
    %v145 = vadd.f32 %v38, %v144
    %v146 = vmul.f32 %v94, %v137
    %v147 = vmul.f32 %v113, %v141
    %v148 = vadd.f32 %v146, %v147
    %v149 = vmul.f32 %v132, %v145
    %v150 = vadd.f32 %v148, %v149
    %v151 = vadd.f32 %v94, %v113
    %v152 = vadd.f32 %v151, %v132
    %v153 = vrcp.pop %v152
    %v154 = vmul.f32 %v152, %v153
    %v155 = vsub.f32 1.0, %v154
    %v156 = vmul.f32 %v153, %v155
    %v157 = vadd.f32 %v153, %v156
    %vm158 = vweird.f32 %v152
    %vm159 = vweird.f32 %v153
    %vm160 = vmor %vm158, %vm159
    %v161 = vsel %vm160, %v153, %v157
    %v162 = vand.u32 2147483647, %v152
    %vm163 = vcmp.eq.f32.partialorder %v162, 8.507059e+37
    %v164 = vand.u32 %v152, 2147483648
    %v165 = vor.u32 1.1754944e-38, %v164
    %v166 = vsel %vm163, %v165, %v161
    %v167 = vmul.f32 %v150, %v166
    %v168 = vsub.f32 %v35, %v37
    %169 = vrot.lane.b32.xlu0 %v168, 1
    %v170 = vpop.permute.xlu0 %169
    %171 = vrot.lane.b32.xlu0 %v168, 127
    %v172 = vpop.permute.xlu0 %171
    %173 = vrot.lane.b32.xlu0 %v168, 126
    %v174 = vpop.permute.xlu0 %173
    %175 = vrot.lane.b32.xlu0 %v168, 125
    %v176 = vpop.permute.xlu0 %175
    %v177 = vsub.f32 %v176, %v174
    %v178 = vsub.f32 %v174, %v172
    %v179 = vsub.f32 %v172, %v168
    %v180 = vsub.f32 %v168, %v170
    %v181 = vsub.f32 %v177, %v178
    %v182 = vsub.f32 %v178, %v179
    %v183 = vsub.f32 %v179, %v180
    %v184 = vmul.f32 %v178, 3.0
    %v185 = vsub.f32 %v177, %v184
    %v186 = vadd.f32 %v178, %v179
    %v187 = vmul.f32 %v179, 3.0
    %v188 = vsub.f32 %v187, %v180
    %v189 = vmul.f32 %v181, 1.0833334
    %v190 = vmul.f32 %v189, %v181
    %v191 = vmul.f32 %v185, 0.25
    %v192 = vmul.f32 %v191, %v185
    %v193 = vadd.f32 %v190, %v192
    %v194 = vmul.f32 %v182, 1.0833334
    %v195 = vmul.f32 %v194, %v182
    %v196 = vmul.f32 %v186, 0.25
    %v197 = vmul.f32 %v196, %v186
    %v198 = vadd.f32 %v195, %v197
    %v199 = vmul.f32 %v183, 1.0833334
    %v200 = vmul.f32 %v199, %v183
    %v201 = vmul.f32 %v188, 0.25
    %v202 = vmul.f32 %v201, %v188
    %v203 = vadd.f32 %v200, %v202
    %v204 = vsub.f32 %v193, %v203
    %v205 = vand.u32 2147483647, %v204
    %v206 = vadd.f32 %v193, 1e-06
    %v207 = vrcp.pop %v206
    %v208 = vmul.f32 %v206, %v207
    %v209 = vsub.f32 1.0, %v208
    %v210 = vmul.f32 %v207, %v209
    %v211 = vadd.f32 %v207, %v210
    %vm212 = vweird.f32 %v206
    %vm213 = vweird.f32 %v207
    %vm214 = vmor %vm212, %vm213
    %v215 = vsel %vm214, %v207, %v211
    %v216 = vand.u32 2147483647, %v206
    %vm217 = vcmp.eq.f32.partialorder %v216, 8.507059e+37
    %v218 = vand.u32 %v206, 2147483648
    %v219 = vor.u32 1.1754944e-38, %v218
    %v220 = vsel %vm217, %v219, %v215
    %v221 = vmul.f32 %v205, %v220
    %v222 = vmul.f32 %v221, %v221
    %v223 = vadd.f32 %v222, 1.0
    %v224 = vmul.f32 %v223, 0.1
    %v225 = vadd.f32 %v198, 1e-06
    %v226 = vrcp.pop %v225
    %v227 = vmul.f32 %v225, %v226
    %v228 = vsub.f32 1.0, %v227
    %v229 = vmul.f32 %v226, %v228
    %v230 = vadd.f32 %v226, %v229
    %vm231 = vweird.f32 %v225
    %vm232 = vweird.f32 %v226
    %vm233 = vmor %vm231, %vm232
    %v234 = vsel %vm233, %v226, %v230
    %v235 = vand.u32 2147483647, %v225
    %vm236 = vcmp.eq.f32.partialorder %v235, 8.507059e+37
    %v237 = vand.u32 %v225, 2147483648
    %v238 = vor.u32 1.1754944e-38, %v237
    %v239 = vsel %vm236, %v238, %v234
    %v240 = vmul.f32 %v205, %v239
    %v241 = vmul.f32 %v240, %v240
    %v242 = vadd.f32 %v241, 1.0
    %v243 = vmul.f32 %v242, 0.6
    %v244 = vadd.f32 %v203, 1e-06
    %v245 = vrcp.pop %v244
    %v246 = vmul.f32 %v244, %v245
    %v247 = vsub.f32 1.0, %v246
    %v248 = vmul.f32 %v245, %v247
    %v249 = vadd.f32 %v245, %v248
    %vm250 = vweird.f32 %v244
    %vm251 = vweird.f32 %v245
    %vm252 = vmor %vm250, %vm251
    %v253 = vsel %vm252, %v245, %v249
    %v254 = vand.u32 2147483647, %v244
    %vm255 = vcmp.eq.f32.partialorder %v254, 8.507059e+37
    %v256 = vand.u32 %v244, 2147483648
    %v257 = vor.u32 1.1754944e-38, %v256
    %v258 = vsel %vm255, %v257, %v253
    %v259 = vmul.f32 %v205, %v258
    %v260 = vmul.f32 %v259, %v259
    %v261 = vadd.f32 %v260, 1.0
    %v262 = vmul.f32 %v261, 0.3
    %v263 = vmul.f32 %v177, 2.0
    %v264 = vmul.f32 %v178, 5.0
    %v265 = vsub.f32 %v263, %v264
    %v266 = vmul.f32 %v265, 0.16666667
    %v267 = vadd.f32 %v172, %v266
    %v268 = vmul.f32 %v179, 2.0
    %v269 = vadd.f32 %v178, %v268
    %v270 = vmul.f32 %v269, 0.16666667
    %v271 = vsub.f32 %v172, %v270
    %v272 = vmul.f32 %v179, 4.0
    %v273 = vsub.f32 %v180, %v272
    %v274 = vmul.f32 %v273, 0.16666667
    %v275 = vadd.f32 %v172, %v274
    %v276 = vmul.f32 %v224, %v267
    %v277 = vmul.f32 %v243, %v271
    %v278 = vadd.f32 %v276, %v277
    %v279 = vmul.f32 %v262, %v275
    %v280 = vadd.f32 %v278, %v279
    %v281 = vadd.f32 %v224, %v243
    %v282 = vadd.f32 %v281, %v262
    %v283 = vrcp.pop %v282
    %v284 = vmul.f32 %v282, %v283
    %v285 = vsub.f32 1.0, %v284
    %v286 = vmul.f32 %v283, %v285
    %v287 = vadd.f32 %v283, %v286
    %vm288 = vweird.f32 %v282
    %vm289 = vweird.f32 %v283
    %vm290 = vmor %vm288, %vm289
    %v291 = vsel %vm290, %v283, %v287
    %v292 = vand.u32 2147483647, %v282
    %vm293 = vcmp.eq.f32.partialorder %v292, 8.507059e+37
    %v294 = vand.u32 %v282, 2147483648
    %v295 = vor.u32 1.1754944e-38, %v294
    %v296 = vsel %vm293, %v295, %v291
    %v297 = vmul.f32 %v280, %v296
    %v298 = vadd.f32 %v167, %v297
    %v299 = vmul.f32 %v298, 0.5
    %300 = vrot.lane.b32.xlu0 %v299, 1
    %v301 = vpop.permute.xlu0 %300
    %v302 = vsub.f32 %v299, %v301
    %303 = vrot.lane.b32.xlu0 %v30, 1
    %v304 = vpop.permute.xlu0 %303
    %305 = vrot.lane.b32.xlu0 %v30, 127
    %v306 = vpop.permute.xlu0 %305
    %307 = vrot.lane.b32.xlu0 %v30, 2
    %v308 = vpop.permute.xlu0 %307
    %309 = vrot.lane.b32.xlu0 %v30, 126
    %v310 = vpop.permute.xlu0 %309
    %311 = vrot.lane.b32.xlu0 %v30, 3
    %v312 = vpop.permute.xlu0 %311
    %313 = vrot.lane.b32.xlu0 %v30, 125
    %v314 = vpop.permute.xlu0 %313
    %v315 = vmul.f32 %v30, 2.0
    %v316 = vsub.f32 %v306, %v315
    %v317 = vadd.f32 %v316, %v304
    %v318 = vmul.f32 %v317, 0.64
    %v319 = vmul.f32 %v308, 8.0
    %v320 = vsub.f32 %v312, %v319
    %v321 = vmul.f32 %v304, 13.0
    %v322 = vadd.f32 %v320, %v321
    %v323 = vmul.f32 %v306, 13.0
    %v324 = vsub.f32 %v322, %v323
    %v325 = vmul.f32 %v310, 8.0
    %v326 = vadd.f32 %v324, %v325
    %v327 = vsub.f32 %v326, %v314
    %v328 = vmul.f32 %v327, 15.859712
    %v329 = vmul.f32 %v302, -64.0
    %v331 = vperm.slane %v31, 0
    %v333 = vadd.f32 %v329, %v331
    %v334 = vadd.f32 %v333, %v318
    %v335 = vsub.f32 %v334, %v328
    %336 = vst [vmem:[#allocation6] sm:$0xff] %v335
    // Predicated region
    $region18: #{tpu_custom_call.1} parent=1 // pred_check
      _
    $region19: #{tpu_custom_call.1} parent=1 // pred_check_branch
      %338 = sbr.rel (0) target = $region21
    $region20: #{tpu_custom_call.1} parent=1 // pred_region
      %340 = vsyncadd [#allocation5], 0
      %s342 = sshll.u32 [#allocation6], 4
      %s343 = int_to_ptr.vmem [resolvable:$true] %s342
      %s344 = sshll.u32 %s3, 4
      %s345 = int_to_ptr.hbm [resolvable:$true] %s344
      %347 = dma.vmem_to_hbm [thread:$0]  %s343, 128, %s345, [#allocation5]
    $region21: #{tpu_custom_call.1} parent=1 // pred_fallthru
      _
    // Predicated region
    $region22: #{tpu_custom_call.1} parent=1 // pred_check
      _
    $region23: #{tpu_custom_call.1} parent=1 // pred_check_branch
      %349 = sbr.rel (0) target = $region25
    $region24: #{tpu_custom_call.1} parent=1 // pred_region
      %351 = dma.done [#allocation5], 128
    $region25: #{tpu_custom_call.1} parent=1 // pred_fallthru
      _
    %352 = vsyncpa [#allocation4], 1
    %353 = vsyncpa [#allocation5], 1

</llo_original>
